<compile_context>
chip_gen: v6e
topology: v6e:2x2x1
jax: 0.10.0
libtpu: 0.0.40
codegen_flags: <defaults>
</compile_context>

<pallas_src>
import jax
import jax.numpy as jnp
from jax.experimental import pallas as pl
from jax.experimental.pallas import tpu as pltpu

_LANE = 128
# Tile-size preferences (shape-aware final choice in _choose_tiles).
_PREF_TM, _PREF_TN, _PREF_TK = 256, 256, 512
# Conservative per-kernel VMEM budget: fits the 32 MiB scoped default on v6e/v7x
# (and is raised explicitly via vmem_limit_bytes where needed, e.g. v5e's 16 MiB).
_VMEM_BUDGET = 24 * 1024 * 1024


def _round_up(x, m):
    return (x + m - 1) // m * m


def _pick_tile(dim_p, pref):
    """Largest multiple of 128 that divides dim_p and is <= pref (>= 128)."""
    t = min(pref, dim_p)
    t -= t % _LANE
    t = max(t, _LANE)
    while dim_p % t:
        t -= _LANE
    return t


def _choose_tiles(m_p, n_p, k_p):
    tm = _pick_tile(m_p, _PREF_TM)
    tn = _pick_tile(n_p, _PREF_TN)
    tk = _pick_tile(k_p, _PREF_TK)
    # v7x megacore: keep >= 2 blocks on at least one "parallel" axis when possible,
    # otherwise the whole grid collapses onto a single TensorCore.
    if m_p // tm == 1 and n_p // tn == 1 and m_p >= 2 * _LANE:
        half = (m_p // 2) - (m_p // 2) % _LANE
        tm = _pick_tile(m_p, max(_LANE, half))
    return tm, tn, tk


def _pad_cast(arr, rows, cols, dtype):
    """Pad/cast only when needed (aligned callers skip the extra HBM pass)."""
    r, c = arr.shape
    if (r, c) == (rows, cols):
        return arr if arr.dtype == dtype else arr.astype(dtype)
    return jnp.zeros((rows, cols), dtype).at[:r, :c].set(arr.astype(dtype))


# ---------------------------------------------------------------------------
# Generic tiled matmul kernel:  C = [ReLU](A @ B [+ bias])
#   * f32 VMEM accumulator, reduction axis last, pl.when init/finalize
#   * optional fully-VMEM-resident RHS column panel (sliced with pl.ds)
#   * optional fused bias (folded into the accumulator init) + ReLU epilogue
# ---------------------------------------------------------------------------
def _make_mm_kernel(*, resident_rhs, tk, bias_relu):
    def kernel(*refs):
        if bias_relu:
            a_ref, b_ref, bias_ref, o_ref, acc_ref = refs
        else:
            a_ref, b_ref, o_ref, acc_ref = refs
        k = pl.program_id(2)

        @pl.when(k == 0)
        def _():
            if bias_relu:
                acc_ref[...] = jnp.broadcast_to(
                    bias_ref[...].astype(jnp.float32), acc_ref.shape)
            else:
                acc_ref[...] = jnp.zeros_like(acc_ref)

        if resident_rhs:
            off = pl.multiple_of(k * tk, tk)
            b_blk = b_ref[pl.ds(off, tk), :]
        else:
            b_blk = b_ref[...]

        acc_ref[...] += jnp.dot(a_ref[...], b_blk,
                                preferred_element_type=jnp.float32)

        @pl.when(k == pl.num_programs(2) - 1)
        def _():
            res = acc_ref[...]
            if bias_relu:
                res = jnp.maximum(res, 0.0)
            o_ref[...] = res.astype(o_ref.dtype)

    return kernel


def _matmul(a, b, *, bias=None, out_dtype):
    """Tiled Pallas matmul; bias+ReLU epilogue fused when `bias` is given."""
    m_p, k_p = a.shape
    k_p2, n_p = b.shape
    assert k_p == k_p2
    assert m_p % _LANE == 0 and n_p % _LANE == 0 and k_p % _LANE == 0

    tm, tn, tk = _choose_tiles(m_p, n_p, k_p)

    a_bytes = jnp.dtype(a.dtype).itemsize
    b_bytes = jnp.dtype(b.dtype).itemsize
    o_bytes = jnp.dtype(out_dtype).itemsize

    fixed = (2 * tm * tk * a_bytes      # A tiles (double-buffered)
             + 2 * tm * tn * o_bytes    # output tiles
             + tm * tn * 4              # f32 accumulator
             + (2 * tn * 4 if bias is not None else 0))
    panel_bytes = 2 * k_p * tn * b_bytes   # assume default double-buffered panel
    resident_rhs = fixed + panel_bytes <= _VMEM_BUDGET

    if resident_rhs:
        # Full-K column panel: DMAed from HBM only when j changes; kk slices in-kernel.
        rhs_spec = pl.BlockSpec((k_p, tn), lambda i, j, kk: (0, j))
        rhs_bytes = panel_bytes
    else:
        rhs_spec = pl.BlockSpec((tk, tn), lambda i, j, kk: (kk, j))
        rhs_bytes = 2 * tk * tn * b_bytes

    vmem_est = fixed + rhs_bytes
    # Raise the scoped-VMEM limit when needed (v5e default is 16 MiB) but stay
    # comfortably under v7x's 64 MiB physical VMEM.
    vmem_limit = int(min(max(2 * vmem_est, 16 << 20), 48 << 20))

    kernel = _make_mm_kernel(resident_rhs=resident_rhs, tk=tk,
                             bias_relu=bias is not None)

    in_specs = [pl.BlockSpec((tm, tk), lambda i, j, kk: (i, kk)), rhs_spec]
    operands = [a, b]
    if bias is not None:
        in_specs.append(pl.BlockSpec((1, tn), lambda i, j, kk: (0, j)))
        operands.append(bias)

    return pl.pallas_call(
        kernel,
        out_shape=jax.ShapeDtypeStruct((m_p, n_p), out_dtype),
        grid=(m_p // tm, n_p // tn, k_p // tk),
        in_specs=in_specs,
        out_specs=pl.BlockSpec((tm, tn), lambda i, j, kk: (i, j)),
        scratch_shapes=[pltpu.VMEM((tm, tn), jnp.float32)],
        compiler_params=pltpu.CompilerParams(
            dimension_semantics=("parallel", "parallel", "arbitrary"),
            vmem_limit_bytes=vmem_limit),
    )(*operands)


# ---------------------------------------------------------------------------
# GCN forward: ReLU(A_hat @ X @ W + b) with dynamic matmul association.
# ---------------------------------------------------------------------------
def gcn_forward(a_hat, x, w, b, *,
                compute_dtype=jnp.bfloat16, out_dtype=jnp.bfloat16):
    n, f = x.shape
    h = w.shape[1]
    assert a_hat.shape == (n, n)
    assert b.shape == (1, h)

    n_p = _round_up(n, _LANE)
    f_p = _round_up(f, _LANE)
    h_p = _round_up(h, _LANE)

    # Pad/cast only when the caller's data is not already aligned + compute_dtype.
    a_p = _pad_cast(a_hat, n_p, n_p, compute_dtype)
    x_p = _pad_cast(x, n_p, f_p, compute_dtype)
    w_p = _pad_cast(w, f_p, h_p, compute_dtype)
    b_p = _pad_cast(b, 1, h_p, jnp.float32)

    # Dynamic association: the dominant cost is the N^2 * min(F, H) aggregation.
    if f <= h:
        # (A_hat @ X) @ W  — aggregate in the cheaper F-wide space first.
        ax = _matmul(a_p, x_p, out_dtype=compute_dtype)
        out_p = _matmul(ax, w_p, bias=b_p, out_dtype=out_dtype)
    else:
        # A_hat @ (X @ W)
        xw = _matmul(x_p, w_p, out_dtype=compute_dtype)
        out_p = _matmul(a_p, xw, bias=b_p, out_dtype=out_dtype)

    # Padded rows hold ReLU(bias) garbage — always slice before use.
    return out_p[:n, :h]


def reference_forward(a_hat, x, w, b, *, compute_dtype=jnp.bfloat16):
    # Mirror the kernel's arithmetic (bf16 operands + bf16 intermediate,
    # f32 accumulation, same association) for a tight comparison.
    hp = jax.lax.Precision.HIGHEST
    cast = lambda t: t.astype(compute_dtype).astype(jnp.float32)
    a32, x32, w32 = cast(a_hat), cast(x), cast(w)
    if x.shape[1] <= w.shape[1]:
        ax = cast(jnp.dot(a32, x32, precision=hp).astype(compute_dtype))
        y = jnp.dot(ax, w32, precision=hp) + b
    else:
        xw = cast(jnp.dot(x32, w32, precision=hp).astype(compute_dtype))
        y = jnp.dot(a32, xw, precision=hp) + b
    return jnp.maximum(y, 0.0)


if __name__ == "__main__":
    key = jax.random.PRNGKey(0)
    k_adj, k_x, k_w, k_b = jax.random.split(key, 4)

    # Small, non-128-aligned shapes to exercise the padding + tiling path:
    # 200 nodes, 48 input features, 96 hidden units.
    N, F, H = 200, 48, 96

    # Random symmetric adjacency with self-loops, symmetrically normalized:
    # A_hat = D^{-1/2} (A + I) D^{-1/2}
    raw = (jax.random.uniform(k_adj, (N, N)) > 0.9).astype(jnp.float32)
    adj = jnp.maximum(jnp.maximum(raw, raw.T), jnp.eye(N, dtype=jnp.float32))
    deg = jnp.sum(adj, axis=1)
    d_inv_sqrt = 1.0 / jnp.sqrt(deg)
    a_hat = adj * d_inv_sqrt[:, None] * d_inv_sqrt[None, :]

    x = jax.random.normal(k_x, (N, F), dtype=jnp.float32)
    w = jax.random.normal(k_w, (F, H), dtype=jnp.float32) * (1.0 / jnp.sqrt(F))
    b = jax.random.normal(k_b, (1, H), dtype=jnp.float32) * 0.1

    out = jax.block_until_ready(gcn_forward(a_hat, x, w, b))
    ref = reference_forward(a_hat, x, w, b)

    assert out.shape == (N, H)
    out_f32 = out.astype(jnp.float32)
    assert jnp.allclose(out_f32, ref, atol=2e-2, rtol=2e-2), \
        float(jnp.max(jnp.abs(out_f32 - ref)))

    print("KERNEL_OK")
</pallas_src>

<mosaic_0001>
module attributes {stable_mosaic.version = 11 : i64} {
  func.func @kernel(%arg0: i32, %arg1: i32, %arg2: i32, %arg3: memref<128x256xbf16, #tpu.memory_space<vmem>>, %arg4: memref<256x128xbf16, #tpu.memory_space<vmem>>, %arg5: memref<128x128xbf16, #tpu.memory_space<vmem>>, %arg6: memref<128x128xf32, #tpu.memory_space<vmem>>) attributes {dimension_semantics = [#tpu.dimension_semantics<parallel>, #tpu.dimension_semantics<parallel>, #tpu.dimension_semantics<arbitrary>], iteration_bounds = array<i64: 2, 1, 1>, scalar_prefetch = 0 : i64, scratch_operands = 1 : i64, tpu.core_type = #tpu.core_type<tc>, window_params = [{transform_indices = @transform_0, window_bounds = array<i64: 128, 256>}, {transform_indices = @transform_1, window_bounds = array<i64: 256, 128>}, {transform_indices = @transform_2, window_bounds = array<i64: 128, 128>}]} {
    %c0_i32 = arith.constant 0 : i32
    %0 = arith.cmpi eq, %arg2, %c0_i32 : i32
    %1 = arith.extui %0 : i1 to i32
    %c0_i32_0 = arith.constant 0 : i32
    %2 = arith.cmpi ne, %1, %c0_i32_0 : i32
    scf.if %2 {
      %cst_9 = arith.constant 0.000000e+00 : f32
      %15 = vector.broadcast %cst_9 : f32 to vector<128x128xf32>
      %c0_10 = arith.constant 0 : index
      %c0_11 = arith.constant 0 : index
      %16 = vector.load %arg6[%c0_10, %c0_11] : memref<128x128xf32, #tpu.memory_space<vmem>>, vector<128x128xf32>
      tpu.vector_store %arg6[%c0_10, %c0_11], %15 {strides = array<i32>} : memref<128x128xf32, #tpu.memory_space<vmem>>, vector<128x128xf32>,
    } else {
    }
    %c256_i32 = arith.constant 256 : i32
    %3 = arith.muli %arg2, %c256_i32 : i32
    %4 = tpu.assume_multiple %3, 256 : i32
    %5 = arith.index_cast %4 : i32 to index
    %c0 = arith.constant 0 : index
    %6 = vector.load %arg4[%5, %c0] : memref<256x128xbf16, #tpu.memory_space<vmem>>, vector<256x128xbf16>
    %c0_1 = arith.constant 0 : index
    %c0_2 = arith.constant 0 : index
    %7 = vector.load %arg6[%c0_1, %c0_2] : memref<128x128xf32, #tpu.memory_space<vmem>>, vector<128x128xf32>
    %c0_3 = arith.constant 0 : index
    %c0_4 = arith.constant 0 : index
    %8 = vector.load %arg3[%c0_3, %c0_4] : memref<128x256xbf16, #tpu.memory_space<vmem>>, vector<128x256xbf16>
    %cst = arith.constant dense<0.000000e+00> : vector<128x128xf32>
    %9 = tpu.matmul %8, %6, %cst {dimension_numbers = #tpu.dot_dimension_numbers<[1], [0], [0], [1], [0, 0, 1, 1], [], []>} : vector<128x256xbf16>, vector<256x128xbf16>, vector<128x128xf32> -> vector<128x128xf32>
    %10 = arith.addf %7, %9 : vector<128x128xf32>
    %c0_5 = arith.constant 0 : index
    %c0_6 = arith.constant 0 : index
    %11 = vector.load %arg6[%c0_5, %c0_6] : memref<128x128xf32, #tpu.memory_space<vmem>>, vector<128x128xf32>
    tpu.vector_store %arg6[%c0_5, %c0_6], %10 {strides = array<i32>} : memref<128x128xf32, #tpu.memory_space<vmem>>, vector<128x128xf32>,
    %c0_i32_7 = arith.constant 0 : i32
    %12 = arith.cmpi eq, %arg2, %c0_i32_7 : i32
    %13 = arith.extui %12 : i1 to i32
    %c0_i32_8 = arith.constant 0 : i32
    %14 = arith.cmpi ne, %13, %c0_i32_8 : i32
    scf.if %14 {
      %c0_9 = arith.constant 0 : index
      %c0_10 = arith.constant 0 : index
      %15 = vector.load %arg6[%c0_9, %c0_10] : memref<128x128xf32, #tpu.memory_space<vmem>>, vector<128x128xf32>
      %16 = arith.truncf %15 : vector<128x128xf32> to vector<128x128xbf16>
      %c0_11 = arith.constant 0 : index
      %c0_12 = arith.constant 0 : index
      %17 = vector.load %arg5[%c0_11, %c0_12] : memref<128x128xbf16, #tpu.memory_space<vmem>>, vector<128x128xbf16>
      tpu.vector_store %arg5[%c0_11, %c0_12], %16 {strides = array<i32>} : memref<128x128xbf16, #tpu.memory_space<vmem>>, vector<128x128xbf16>,
    } else {
    }
    return
  }
  func.func @transform_0(%arg0: i32, %arg1: i32, %arg2: i32) -> (i32, i32) {
    %c0_i32 = arith.constant 0 : i32
    return %arg0, %arg2 : i32, i32
  }
  func.func @transform_1(%arg0: i32, %arg1: i32, %arg2: i32) -> (i32, i32) {
    %c0_i32 = arith.constant 0 : i32
    %c0_i32_0 = arith.constant 0 : i32
    return %c0_i32, %arg1 : i32, i32
  }
  func.func @transform_2(%arg0: i32, %arg1: i32, %arg2: i32) -> (i32, i32) {
    %c0_i32 = arith.constant 0 : i32
    return %arg0, %arg1 : i32, i32
  }
}

</mosaic_0001>

<llo_original>
// kernel: tpu_custom_call.1
$region0: #{tpu_custom_call.1}
  #allocation0 [shape = 'u32[]', space=smem, size = 0x4, offset = 0x4, fixed_abs, tag = 'smem constant byte address 0x4 - core index']
  #allocation1 [shape = 'u32[144,128]{1,0:T(1,128)}', space=vmem, size = 0x12000, scoped, tag = 'internal scratch']
  #allocation2 [shape = 'f32[128,128]{1,0:T(8,128)}', space=vmem, size = 0x10000, scoped, tag = 'scratch operand']
  %s0 = inlined_call_operand.hbm [shape: bf16[256,256], index: 0, kind: input, shape index: {}]
  %s1 = inlined_call_operand.hbm [shape: bf16[256,128], index: 1, kind: input, shape index: {}]
  %s2 = inlined_call_operand.hbm [shape: bf16[256,128], index: 2, kind: output, shape index: {}]
  %s3 = sld [smem:[#allocation0]]
  $region57: #{tpu_custom_call.1} parent=0
    _
  %s5 = ssub.s32 1, %s3
  %s6 = scalar_select 0, %s5, %s3
  $region1: #{tpu_custom_call.1} parent=0
    #allocation3 [shape = 'u8[131072]{0}', space=vmem, size = 0x20000, scoped, tag = 'input window, operand 0']
    #allocation4 [shape = 's32[2]{0}', space=sflag, size = 0x8, scoped, tag = 'scoped memory for tpu_custom_call.1']
    #allocation5 [shape = 's32[2]{0}', space=sflag, size = 0x8, scoped, tag = 'scoped memory for tpu_custom_call.1']
    #allocation6 [shape = 'u8[65536]{0}', space=vmem, size = 0x10000, scoped, tag = 'input window, operand 1, single buffered']
    #allocation7 [shape = 's32[1]{0}', space=sflag, size = 0x4, scoped, tag = 'scoped memory for tpu_custom_call.1']
    #allocation8 [shape = 'u8[65536]{0}', space=vmem, size = 0x10000, scoped, tag = 'output window, operand 0']
    %7 = vsyncpa [#allocation4], 0
    %s8 = scalar_lea.sflag [#allocation4], 1
    %9 = vsyncpa %s8, 0
    %10 = vsyncpa [#allocation7], 0
    %11 = vsyncpa [#allocation5], 0
    %s12 = scalar_lea.sflag [#allocation5], 1
    %13 = vsyncpa %s12, 0
    loop: start=0, step=1, limit=4
    $region2: #{tpu_custom_call.1} parent=1 // loop_pre_header
      _
    $region3: #{tpu_custom_call.1} parent=1 // loop_header
      %s15 = sphi 0, %s19
      %p16 = scmp.ge.s32.totalorder %s15, 4
      %s22 = sphi 0, %s41
      %s23 = sphi 0, %s37
      %s24 = sphi 0, %s33
      %s25 = sphi 0, %s22
      %s26 = sphi 0, %s23
      %s27 = sphi 0, %s24
      %s28 = sphi 0, %s25
      %s29 = sphi 0, %s26
      %s30 = sphi 0, %s27
      %s46 = sphi 0, %s48
      %s49 = sphi 0, %s46
      %s50 = sphi 0, %s49
      %s66 = sphi 0, %s50
      %s72 = sphi 0, %s74
      %s75 = sphi 0, %s72
      %s76 = sphi 0, %s75
      %s92 = sphi 0, %s76
      %s100 = sphi 0, %s102
      %s103 = sphi 0, %s100
      %s104 = sphi 0, %s103
      %s120 = sphi 0, %s104
    $region4: #{tpu_custom_call.1} parent=1 // loop_header_branch
      %18 = sbr.rel (%p16) target = $region8
    $region5: #{tpu_custom_call.1} parent=1 // loop_body
      %s20 = ssub.s32 %s15, 1
      %s21 = ssub.s32 %s15, 2
      %s31 = sadd.s32 1, %s24
      %p32 = scmp.ge.s32.totalorder %s31, 1
      %s33 = scalar_select %p32, 0, %s31
      %s34 = sadd.s32 1, %s23
      %s35 = scalar_select %p32, %s34, %s23
      %p36 = scmp.ge.s32.totalorder %s35, 1
      %s37 = scalar_select %p36, 0, %s35
      %s38 = sadd.s32 1, %s22
      %s39 = scalar_select %p36, %s38, %s22
      %p40 = scmp.ge.s32.totalorder %s39, 2
      %s41 = scalar_select %p40, 0, %s39
      %s42 = ssub.s32 %s22, %s41
      %s43 = ssub.s32 %s24, %s33
      %s44 = sor.u32 %s42, %s43
      %p45 = scmp.eq.s32.totalorder %s44, 0
      %s47 = sadd.s32 %s46, 1
      %s48 = scalar_select %p45, %s46, %s47
      %p51 = pneg %p45
      %p52 = scmp.eq.s32.totalorder %s15, 1
      %p53 = por %p51, %p52
      %p54 = scmp.ne.s32.totalorder %s46, %s49
      %p55 = scmp.eq.s32.totalorder %s15, 0
      %p56 = por %p54, %p55
      %p57 = scmp.ne.s32.totalorder %s46, %s49
      %p58 = scmp.eq.s32.totalorder %s20, 1
      %p59 = por %p57, %p58
      %p60 = scmp.ne.s32.totalorder %s49, %s50
      %p61 = scmp.eq.s32.totalorder %s20, 0
      %p62 = por %p60, %p61
      %p63 = scmp.ne.s32.totalorder %s49, %s50
      %p64 = scmp.eq.s32.totalorder %s21, 1
      %p65 = por %p63, %p64
      %p67 = scmp.ne.s32.totalorder %s50, %s66
      %p68 = scmp.eq.s32.totalorder %s21, 0
      %p69 = por %p67, %p68
      %s70 = ssub.s32 %s23, %s37
      %p71 = scmp.eq.s32.totalorder %s70, 0
      %s73 = sadd.s32 %s72, 1
      %s74 = scalar_select %p71, %s72, %s73
      %p77 = pneg %p71
      %p78 = scmp.eq.s32.totalorder %s15, 1
      %p79 = por %p77, %p78
      %p80 = scmp.ne.s32.totalorder %s72, %s75
      %p81 = scmp.eq.s32.totalorder %s15, 0
      %p82 = por %p80, %p81
      %p83 = scmp.ne.s32.totalorder %s72, %s75
      %p84 = scmp.eq.s32.totalorder %s20, 1
      %p85 = por %p83, %p84
      %p86 = scmp.ne.s32.totalorder %s75, %s76
      %p87 = scmp.eq.s32.totalorder %s20, 0
      %p88 = por %p86, %p87
      %p89 = scmp.ne.s32.totalorder %s75, %s76
      %p90 = scmp.eq.s32.totalorder %s21, 1
      %p91 = por %p89, %p90
      %p93 = scmp.ne.s32.totalorder %s76, %s92
      %p94 = scmp.eq.s32.totalorder %s21, 0
      %p95 = por %p93, %p94
      %s96 = ssub.s32 %s22, %s41
      %s97 = ssub.s32 %s23, %s37
      %s98 = sor.u32 %s96, %s97
      %p99 = scmp.eq.s32.totalorder %s98, 0
      %s101 = sadd.s32 %s100, 1
      %s102 = scalar_select %p99, %s100, %s101
      %p105 = pneg %p99
      %p106 = scmp.eq.s32.totalorder %s15, 1
      %p107 = por %p105, %p106
      %p108 = scmp.ne.s32.totalorder %s100, %s103
      %p109 = scmp.eq.s32.totalorder %s15, 0
      %p110 = por %p108, %p109
      %p111 = scmp.ne.s32.totalorder %s100, %s103
      %p112 = scmp.eq.s32.totalorder %s20, 1
      %p113 = por %p111, %p112
      %p114 = scmp.ne.s32.totalorder %s103, %s104
      %p115 = scmp.eq.s32.totalorder %s20, 0
      %p116 = por %p114, %p115
      %p117 = scmp.ne.s32.totalorder %s103, %s104
      %p118 = scmp.eq.s32.totalorder %s21, 1
      %p119 = por %p117, %p118
      %p121 = scmp.ne.s32.totalorder %s104, %s120
      %p122 = scmp.eq.s32.totalorder %s21, 0
      %p123 = por %p121, %p122
      %p124 = scmp.le.s32.totalorder 1, %s15
      %p125 = scmp.lt.s32.totalorder %s15, 3
      %p126 = pnand %p124, %p125
      %p127 = pneg %p126
      // Predicated region
      $region9: #{tpu_custom_call.1} parent=5 // pred_check
        _
      $region10: #{tpu_custom_call.1} parent=5 // pred_check_branch
        %129 = sbr.rel (%p126) target = $region12
      $region11: #{tpu_custom_call.1} parent=5 // pred_region
        %s130 = ssub.s32 %s15, 1
        // Predicated region
        $region13: #{tpu_custom_call.1} parent=11 // pred_check
          %p131 = pneg %p88
        $region14: #{tpu_custom_call.1} parent=11 // pred_check_branch
          %133 = sbr.rel (%p131) target = $region16
        $region15: #{tpu_custom_call.1} parent=11 // pred_region
          %s135 = ssub.s32 2048, 2048
          %136 = vsyncadd [#allocation7], %s135
          %s137 = smul.addr %s26, 64
          %s138 = scalar_lea.hbm %s1, %s137
          %s139 = sshll.u32 [#allocation6], 4
          %s140 = int_to_ptr.vmem [resolvable:$true] %s139
          %145 = dma.hbm_to_vmem [thread:$0]  %s138, 2048, %s140, [#allocation7], 64, 64, 4
        $region16: #{tpu_custom_call.1} parent=11 // pred_fallthru
          _
      $region12: #{tpu_custom_call.1} parent=5 // pred_fallthru
        _
      %p146 = scmp.lt.s32.totalorder %s15, 2
      // Predicated region
      $region17: #{tpu_custom_call.1} parent=5 // pred_check
        %p147 = pneg %p146
      $region18: #{tpu_custom_call.1} parent=5 // pred_check_branch
        %149 = sbr.rel (%p147) target = $region20
      $region19: #{tpu_custom_call.1} parent=5 // pred_region
        // Predicated region
        $region21: #{tpu_custom_call.1} parent=19 // pred_check
          %p150 = pneg %p56
        $region22: #{tpu_custom_call.1} parent=19 // pred_check_branch
          %152 = sbr.rel (%p150) target = $region24
        $region23: #{tpu_custom_call.1} parent=19 // pred_region
          %s153 = sand.u32 %s46, 1
          %s154 = scalar_lea.sflag [#allocation4], %s153
          %s155 = sand.u32 %s46, 1
          %s156 = smul.addr %s155, 128
          %s157 = scalar_lea.vmem [#allocation3], %s156
          %s158 = smul.u32 16, %s22
          %s159 = smul.u32 2, %s24
          %s161 = ssub.s32 2048, 2048
          %162 = vsyncadd %s154, %s161
          %s163 = smul.addr %s158, 2
          %s164 = sadd.s32 %s159, %s163
          %s165 = smul.addr %s164, 64
          %s166 = scalar_lea.hbm %s0, %s165
          %s167 = sshll.u32 %s157, 4
          %s168 = int_to_ptr.vmem [resolvable:$true] %s167
          %173 = dma.hbm_to_vmem [thread:$0]  %s166, 2048, %s168, %s154, 128, 128, 8
        $region24: #{tpu_custom_call.1} parent=19 // pred_fallthru
          _
      $region20: #{tpu_custom_call.1} parent=5 // pred_fallthru
        _
      %p174 = scmp.le.s32.totalorder 1, %s15
      %p175 = scmp.lt.s32.totalorder %s15, 3
      %p176 = pnand %p174, %p175
      %p177 = pneg %p176
      // Predicated region
      $region25: #{tpu_custom_call.1} parent=5 // pred_check
        _
      $region26: #{tpu_custom_call.1} parent=5 // pred_check_branch
        %179 = sbr.rel (%p176) target = $region28
      $region27: #{tpu_custom_call.1} parent=5 // pred_region
        %s180 = ssub.s32 %s15, 1
        %s181 = sand.u32 %s49, 1
        %s182 = scalar_lea.sflag [#allocation4], %s181
        %s183 = sand.u32 %s49, 1
        %s184 = smul.addr %s183, 128
        %s185 = scalar_lea.vmem [#allocation3], %s184
        // Predicated region
        $region29: #{tpu_custom_call.1} parent=27 // pred_check
          %p186 = pneg %p62
        $region30: #{tpu_custom_call.1} parent=27 // pred_check_branch
          %188 = sbr.rel (%p186) target = $region32
        $region31: #{tpu_custom_call.1} parent=27 // pred_region
          %189 = dma.done %s182, 2048
        $region32: #{tpu_custom_call.1} parent=27 // pred_fallthru
          _
        // Predicated region
        $region33: #{tpu_custom_call.1} parent=27 // pred_check
          %p190 = pneg %p88
        $region34: #{tpu_custom_call.1} parent=27 // pred_check_branch
          %192 = sbr.rel (%p190) target = $region36
        $region35: #{tpu_custom_call.1} parent=27 // pred_region
          %193 = dma.done [#allocation7], 2048
        $region36: #{tpu_custom_call.1} parent=27 // pred_fallthru
          _
        %s194 = sand.u32 %s49, 1
        %s195 = scalar_lea.sflag [#allocation4], %s194
        %s196 = sand.u32 %s49, 1
        %s197 = smul.addr %s196, 128
        %s198 = scalar_lea.vmem [#allocation3], %s197
        %p199 = pneg %p62
        %p200 = pneg %p59
        %p201 = pneg %p88
        %p202 = pneg %p85
        %p203 = pneg %p116
        %p204 = pneg %p113
        %s205 = sand.u32 %s103, 1
        %s206 = scalar_lea.sflag [#allocation5], %s205
        %s207 = sand.u32 %s103, 1
        %s208 = smul.addr %s207, 64
        %s209 = scalar_lea.vmem [#allocation8], %s208
        %s210 = smul.u32 16, %s25
        %s211 = smul.u32 2, %s27
        %s212 = smul.u32 16, %s25
        %p214 = scmp.eq.s32.totalorder %s27, 0
        // Predicated region
        $region37: #{tpu_custom_call.1} parent=27 // pred_check
          %p215 = pneg %p214
        $region38: #{tpu_custom_call.1} parent=27 // pred_check_branch
          %217 = sbr.rel (%p215) target = $region40
        $region39: #{tpu_custom_call.1} parent=27 // pred_region
          %218 = vst [vmem:[#allocation2] sm:$0xff] 0.0
          %219 = vst [vmem:[#allocation2 + $0x8] sm:$0xff] 0.0
          %220 = vst [vmem:[#allocation2 + $0x10] sm:$0xff] 0.0
          %221 = vst [vmem:[#allocation2 + $0x18] sm:$0xff] 0.0
          %222 = vst [vmem:[#allocation2 + $0x20] sm:$0xff] 0.0
          %223 = vst [vmem:[#allocation2 + $0x28] sm:$0xff] 0.0
          %224 = vst [vmem:[#allocation2 + $0x30] sm:$0xff] 0.0
          %225 = vst [vmem:[#allocation2 + $0x38] sm:$0xff] 0.0
          %226 = vst [vmem:[#allocation2 + $0x40] sm:$0xff] 0.0
          %227 = vst [vmem:[#allocation2 + $0x48] sm:$0xff] 0.0
          %228 = vst [vmem:[#allocation2 + $0x50] sm:$0xff] 0.0
          %229 = vst [vmem:[#allocation2 + $0x58] sm:$0xff] 0.0
          %230 = vst [vmem:[#allocation2 + $0x60] sm:$0xff] 0.0
          %231 = vst [vmem:[#allocation2 + $0x68] sm:$0xff] 0.0
          %232 = vst [vmem:[#allocation2 + $0x70] sm:$0xff] 0.0
          %233 = vst [vmem:[#allocation2 + $0x78] sm:$0xff] 0.0
        $region40: #{tpu_custom_call.1} parent=27 // pred_fallthru
          _
        %s234 = smul.u32 %s27, 256
        %s235 = sshra.s32 %s234, 3
        %s236 = sand.u32 %s234, 7
        %s237 = smul.addr %s235, 4
        %s238 = scalar_lea.vmem [#allocation6], %s237
        %v239 = vld [vmem:[%s238] sm:$0xf]
        %v240 = vld [vmem:[%s238 + $0x4] sm:$0xf]
        %v241 = vld [vmem:[%s238 + $0x8] sm:$0xf]
        %v242 = vld [vmem:[%s238 + $0xc] sm:$0xf]
        %v243 = vld [vmem:[%s238 + $0x10] sm:$0xf]
        %v244 = vld [vmem:[%s238 + $0x14] sm:$0xf]
        %v245 = vld [vmem:[%s238 + $0x18] sm:$0xf]
        %v246 = vld [vmem:[%s238 + $0x1c] sm:$0xf]
        %v247 = vld [vmem:[%s238 + $0x20] sm:$0xf]
        %v248 = vld [vmem:[%s238 + $0x24] sm:$0xf]
        %v249 = vld [vmem:[%s238 + $0x28] sm:$0xf]
        %v250 = vld [vmem:[%s238 + $0x2c] sm:$0xf]
        %v251 = vld [vmem:[%s238 + $0x30] sm:$0xf]
        %v252 = vld [vmem:[%s238 + $0x34] sm:$0xf]
        %v253 = vld [vmem:[%s238 + $0x38] sm:$0xf]
        %v254 = vld [vmem:[%s238 + $0x3c] sm:$0xf]
        %v255 = vld [vmem:[%s238 + $0x40] sm:$0xf]
        %v256 = vld [vmem:[%s238 + $0x44] sm:$0xf]
        %v257 = vld [vmem:[%s238 + $0x48] sm:$0xf]
        %v258 = vld [vmem:[%s238 + $0x4c] sm:$0xf]
        %v259 = vld [vmem:[%s238 + $0x50] sm:$0xf]
        %v260 = vld [vmem:[%s238 + $0x54] sm:$0xf]
        %v261 = vld [vmem:[%s238 + $0x58] sm:$0xf]
        %v262 = vld [vmem:[%s238 + $0x5c] sm:$0xf]
        %v263 = vld [vmem:[%s238 + $0x60] sm:$0xf]
        %v264 = vld [vmem:[%s238 + $0x64] sm:$0xf]
        %v265 = vld [vmem:[%s238 + $0x68] sm:$0xf]
        %v266 = vld [vmem:[%s238 + $0x6c] sm:$0xf]
        %v267 = vld [vmem:[%s238 + $0x70] sm:$0xf]
        %v268 = vld [vmem:[%s238 + $0x74] sm:$0xf]
        %v269 = vld [vmem:[%s238 + $0x78] sm:$0xf]
        %v270 = vld [vmem:[%s238 + $0x7c] sm:$0xf]
        %v271 = vld [vmem:[#allocation2] sm:$0xff]
        %v272 = vld [vmem:[#allocation2 + $0x8] sm:$0xff]
        %v273 = vld [vmem:[#allocation2 + $0x10] sm:$0xff]
        %v274 = vld [vmem:[#allocation2 + $0x18] sm:$0xff]
        %v275 = vld [vmem:[#allocation2 + $0x20] sm:$0xff]
        %v276 = vld [vmem:[#allocation2 + $0x28] sm:$0xff]
        %v277 = vld [vmem:[#allocation2 + $0x30] sm:$0xff]
        %v278 = vld [vmem:[#allocation2 + $0x38] sm:$0xff]
        %v279 = vld [vmem:[#allocation2 + $0x40] sm:$0xff]
        %v280 = vld [vmem:[#allocation2 + $0x48] sm:$0xff]
        %v281 = vld [vmem:[#allocation2 + $0x50] sm:$0xff]
        %v282 = vld [vmem:[#allocation2 + $0x58] sm:$0xff]
        %v283 = vld [vmem:[#allocation2 + $0x60] sm:$0xff]
        %v284 = vld [vmem:[#allocation2 + $0x68] sm:$0xff]
        %v285 = vld [vmem:[#allocation2 + $0x70] sm:$0xff]
        %v286 = vld [vmem:[#allocation2 + $0x78] sm:$0xff]
        %v287 = vld [vmem:[%s185] sm:$0xff]
        %v288 = vld [vmem:[%s185 + $0x8] sm:$0xff]
        %v289 = vld [vmem:[%s185 + $0x10] sm:$0xff]
        %v290 = vld [vmem:[%s185 + $0x18] sm:$0xff]
        %v291 = vld [vmem:[%s185 + $0x20] sm:$0xff]
        %v292 = vld [vmem:[%s185 + $0x28] sm:$0xff]
        %v293 = vld [vmem:[%s185 + $0x30] sm:$0xff]
        %v294 = vld [vmem:[%s185 + $0x38] sm:$0xff]
        %v295 = vld [vmem:[%s185 + $0x40] sm:$0xff]
        %v296 = vld [vmem:[%s185 + $0x48] sm:$0xff]
        %v297 = vld [vmem:[%s185 + $0x50] sm:$0xff]
        %v298 = vld [vmem:[%s185 + $0x58] sm:$0xff]
        %v299 = vld [vmem:[%s185 + $0x60] sm:$0xff]
        %v300 = vld [vmem:[%s185 + $0x68] sm:$0xff]
        %v301 = vld [vmem:[%s185 + $0x70] sm:$0xff]
        %v302 = vld [vmem:[%s185 + $0x78] sm:$0xff]
        %v319 = vunpack.c.l.b16 %v287
        %v320 = vunpack.c.h.b16 %v287
        %v321 = vunpack.c.l.b16 %v288
        %v322 = vunpack.c.h.b16 %v288
        %v323 = vunpack.c.l.b16 %v289
        %v324 = vunpack.c.h.b16 %v289
        %v325 = vunpack.c.l.b16 %v290
        %v326 = vunpack.c.h.b16 %v290
        %v327 = vunpack.c.l.b16 %v291
        %v328 = vunpack.c.h.b16 %v291
        %v329 = vunpack.c.l.b16 %v292
        %v330 = vunpack.c.h.b16 %v292
        %v331 = vunpack.c.l.b16 %v293
        %v332 = vunpack.c.h.b16 %v293
        %v333 = vunpack.c.l.b16 %v294
        %v334 = vunpack.c.h.b16 %v294
        %v335 = vunpack.c.l.b16 %v295
        %v336 = vunpack.c.h.b16 %v295
        %v337 = vunpack.c.l.b16 %v296
        %v338 = vunpack.c.h.b16 %v296
        %v339 = vunpack.c.l.b16 %v297
        %v340 = vunpack.c.h.b16 %v297
        %v341 = vunpack.c.l.b16 %v298
        %v342 = vunpack.c.h.b16 %v298
        %v343 = vunpack.c.l.b16 %v299
        %v344 = vunpack.c.h.b16 %v299
        %v345 = vunpack.c.l.b16 %v300
        %v346 = vunpack.c.h.b16 %v300
        %v347 = vunpack.c.l.b16 %v301
        %v348 = vunpack.c.h.b16 %v301
        %v349 = vunpack.c.l.b16 %v302
        %v350 = vunpack.c.h.b16 %v302
        %v351 = vpack.c.b16 %v321, %v319
        %v352 = vpack.c.b16 %v322, %v320
        %v353 = vpack.c.b16 %v325, %v323
        %v354 = vpack.c.b16 %v326, %v324
        %v355 = vpack.c.b16 %v329, %v327
        %v356 = vpack.c.b16 %v330, %v328
        %v357 = vpack.c.b16 %v333, %v331
        %v358 = vpack.c.b16 %v334, %v332
        %v359 = vpack.c.b16 %v337, %v335
        %v360 = vpack.c.b16 %v338, %v336
        %v361 = vpack.c.b16 %v341, %v339
        %v362 = vpack.c.b16 %v342, %v340
        %v363 = vpack.c.b16 %v345, %v343
        %v364 = vpack.c.b16 %v346, %v344
        %v365 = vpack.c.b16 %v349, %v347
        %v366 = vpack.c.b16 %v350, %v348
        %v415 = vunpack.c.l.b16 %v239
        %v416 = vunpack.c.l.b16 %v240
        %v417 = vunpack.c.l.b16 %v241
        %v418 = vunpack.c.l.b16 %v242
        %v419 = vunpack.c.l.b16 %v243
        %v420 = vunpack.c.l.b16 %v244
        %v421 = vunpack.c.l.b16 %v245
        %v422 = vunpack.c.l.b16 %v246
        %v423 = vunpack.c.l.b16 %v247
        %v424 = vunpack.c.l.b16 %v248
        %v425 = vunpack.c.l.b16 %v249
        %v426 = vunpack.c.l.b16 %v250
        %v427 = vunpack.c.l.b16 %v251
        %v428 = vunpack.c.l.b16 %v252
        %v429 = vunpack.c.l.b16 %v253
        %v430 = vunpack.c.l.b16 %v254
        %v431 = vunpack.c.l.b16 %v255
        %v432 = vunpack.c.l.b16 %v256
        %v433 = vunpack.c.l.b16 %v257
        %v434 = vunpack.c.l.b16 %v258
        %v435 = vunpack.c.l.b16 %v259
        %v436 = vunpack.c.l.b16 %v260
        %v437 = vunpack.c.l.b16 %v261
        %v438 = vunpack.c.l.b16 %v262
        %v439 = vunpack.c.l.b16 %v263
        %v440 = vunpack.c.l.b16 %v264
        %v441 = vunpack.c.l.b16 %v265
        %v442 = vunpack.c.l.b16 %v266
        %v443 = vunpack.c.l.b16 %v267
        %v444 = vunpack.c.l.b16 %v268
        %v445 = vunpack.c.l.b16 %v269
        %v446 = vunpack.c.l.b16 %v270
        %v447 = vpack.c.b16 %v416, %v415
        %v448 = vpack.c.b16 %v418, %v417
        %v449 = vpack.c.b16 %v420, %v419
        %v450 = vpack.c.b16 %v422, %v421
        %v451 = vpack.c.b16 %v424, %v423
        %v452 = vpack.c.b16 %v426, %v425
        %v453 = vpack.c.b16 %v428, %v427
        %v454 = vpack.c.b16 %v430, %v429
        %v455 = vpack.c.b16 %v432, %v431
        %v456 = vpack.c.b16 %v434, %v433
        %v457 = vpack.c.b16 %v436, %v435
        %v458 = vpack.c.b16 %v438, %v437
        %v459 = vpack.c.b16 %v440, %v439
        %v460 = vpack.c.b16 %v442, %v441
        %v461 = vpack.c.b16 %v444, %v443
        %v462 = vpack.c.b16 %v446, %v445
        %479 = vmatprep.subr.bf16.mxu0 0
        %480 = vmatpush1.bf16.msra.mxu0 %v454
        %481 = vmatprep.subr.bf16.mxu0 0
        %482 = vmatpush1.bf16.msra.mxu0 %v453
        %483 = vmatprep.subr.bf16.mxu0 0
        %484 = vmatpush1.bf16.msra.mxu0 %v452
        %485 = vmatprep.subr.bf16.mxu0 0
        %486 = vmatpush1.bf16.msra.mxu0 %v451
        %487 = vmatprep.subr.bf16.mxu0 0
        %488 = vmatpush1.bf16.msra.mxu0 %v450
        %489 = vmatprep.subr.bf16.mxu0 0
        %490 = vmatpush1.bf16.msra.mxu0 %v449
        %491 = vmatprep.subr.bf16.mxu0 0
        %492 = vmatpush1.bf16.msra.mxu0 %v448
        %493 = vmatprep.subr.bf16.mxu0 0
        %494 = vmatpush1.bf16.msra.mxu0 %v447
        %495 = vmatprep.subr.bf16.mxu0 0
        %496 = vmatpush2.bf16.msra.mxu0 %v462
        %497 = vmatprep.subr.bf16.mxu0 0
        %498 = vmatpush2.bf16.msra.mxu0 %v461
        %499 = vmatprep.subr.bf16.mxu0 0
        %500 = vmatpush2.bf16.msra.mxu0 %v460
        %501 = vmatprep.subr.bf16.mxu0 0
        %502 = vmatpush2.bf16.msra.mxu0 %v459
        %503 = vmatprep.subr.bf16.mxu0 0
        %504 = vmatpush2.bf16.msra.mxu0 %v458
        %505 = vmatprep.subr.bf16.mxu0 0
        %506 = vmatpush2.bf16.msra.mxu0 %v457
        %507 = vmatprep.subr.bf16.mxu0 0
        %508 = vmatpush2.bf16.msra.mxu0 %v456
        %509 = vmatprep.subr.bf16.mxu0 0
        %510 = vmatpush2.bf16.msra.mxu0 %v455
        %511 = vmatprep.mubr.bf16.mxu0 %v352
        %512 = vmatmul.mubr.bf16.gmra.mxu0 %v351
        %v513 = vpop.f32.mrf.mxu0
        %v514 = vadd.f32 0.0, %v513
        %v515 = vpop.f32.mrf.mxu0
        %v516 = vpop.f32.mrf.mxu0
        %v517 = vadd.f32 0.0, %v516
        %v518 = vpop.f32.mrf.mxu0
        %519 = vmatprep.mubr.bf16.mxu0 %v354
        %520 = vmatmul.mubr.bf16.gmra.mxu0 %v353
        %v521 = vpop.f32.mrf.mxu0
        %v522 = vadd.f32 0.0, %v521
        %v523 = vpop.f32.mrf.mxu0
        %v524 = vpop.f32.mrf.mxu0
        %v525 = vadd.f32 0.0, %v524
        %v526 = vpop.f32.mrf.mxu0
        %527 = vmatprep.mubr.bf16.mxu0 %v356
        %528 = vmatmul.mubr.bf16.gmra.mxu0 %v355
        %v529 = vpop.f32.mrf.mxu0
        %v530 = vadd.f32 0.0, %v529
        %v531 = vpop.f32.mrf.mxu0
        %v532 = vpop.f32.mrf.mxu0
        %v533 = vadd.f32 0.0, %v532
        %v534 = vpop.f32.mrf.mxu0
        %535 = vmatprep.mubr.bf16.mxu0 %v358
        %536 = vmatmul.mubr.bf16.gmra.mxu0 %v357
        %v537 = vpop.f32.mrf.mxu0
        %v538 = vadd.f32 0.0, %v537
        %v539 = vpop.f32.mrf.mxu0
        %v540 = vpop.f32.mrf.mxu0
        %v541 = vadd.f32 0.0, %v540
        %v542 = vpop.f32.mrf.mxu0
        %543 = vmatprep.mubr.bf16.mxu0 %v360
        %544 = vmatmul.mubr.bf16.gmra.mxu0 %v359
        %v545 = vpop.f32.mrf.mxu0
        %v546 = vadd.f32 0.0, %v545
        %v547 = vpop.f32.mrf.mxu0
        %v548 = vpop.f32.mrf.mxu0
        %v549 = vadd.f32 0.0, %v548
        %v550 = vpop.f32.mrf.mxu0
        %551 = vmatprep.mubr.bf16.mxu0 %v362
        %552 = vmatmul.mubr.bf16.gmra.mxu0 %v361
        %v553 = vpop.f32.mrf.mxu0
        %v554 = vadd.f32 0.0, %v553
        %v555 = vpop.f32.mrf.mxu0
        %v556 = vpop.f32.mrf.mxu0
        %v557 = vadd.f32 0.0, %v556
        %v558 = vpop.f32.mrf.mxu0
        %559 = vmatprep.mubr.bf16.mxu0 %v364
        %560 = vmatmul.mubr.bf16.gmra.mxu0 %v363
        %v561 = vpop.f32.mrf.mxu0
        %v562 = vadd.f32 0.0, %v561
        %v563 = vpop.f32.mrf.mxu0
        %v564 = vpop.f32.mrf.mxu0
        %v565 = vadd.f32 0.0, %v564
        %v566 = vpop.f32.mrf.mxu0
        %567 = vmatprep.mubr.bf16.mxu0 %v366
        %568 = vmatmul.mubr.bf16.gmra.mxu0 %v365
        %v569 = vpop.f32.mrf.mxu0
        %v570 = vadd.f32 0.0, %v569
        %v571 = vpop.f32.mrf.mxu0
        %v572 = vpop.f32.mrf.mxu0
        %v573 = vadd.f32 0.0, %v572
        %v574 = vpop.f32.mrf.mxu0
        %575 = vdwg.mxu0
        %v576 = vadd.f32 %v271, %v514
        %v577 = vadd.f32 %v272, %v517
        %v578 = vadd.f32 %v273, %v522
        %v579 = vadd.f32 %v274, %v525
        %v580 = vadd.f32 %v275, %v530
        %v581 = vadd.f32 %v276, %v533
        %v582 = vadd.f32 %v277, %v538
        %v583 = vadd.f32 %v278, %v541
        %v584 = vadd.f32 %v279, %v546
        %v585 = vadd.f32 %v280, %v549
        %v586 = vadd.f32 %v281, %v554
        %v587 = vadd.f32 %v282, %v557
        %v588 = vadd.f32 %v283, %v562
        %v589 = vadd.f32 %v284, %v565
        %v590 = vadd.f32 %v285, %v570
        %v591 = vadd.f32 %v286, %v573
        %592 = vst [vmem:[#allocation2] sm:$0xff] %v576
        %593 = vst [vmem:[#allocation2 + $0x8] sm:$0xff] %v577
        %594 = vst [vmem:[#allocation2 + $0x10] sm:$0xff] %v578
        %595 = vst [vmem:[#allocation2 + $0x18] sm:$0xff] %v579
        %596 = vst [vmem:[#allocation2 + $0x20] sm:$0xff] %v580
        %597 = vst [vmem:[#allocation2 + $0x28] sm:$0xff] %v581
        %598 = vst [vmem:[#allocation2 + $0x30] sm:$0xff] %v582
        %599 = vst [vmem:[#allocation2 + $0x38] sm:$0xff] %v583
        %600 = vst [vmem:[#allocation2 + $0x40] sm:$0xff] %v584
        %601 = vst [vmem:[#allocation2 + $0x48] sm:$0xff] %v585
        %602 = vst [vmem:[#allocation2 + $0x50] sm:$0xff] %v586
        %603 = vst [vmem:[#allocation2 + $0x58] sm:$0xff] %v587
        %604 = vst [vmem:[#allocation2 + $0x60] sm:$0xff] %v588
        %605 = vst [vmem:[#allocation2 + $0x68] sm:$0xff] %v589
        %606 = vst [vmem:[#allocation2 + $0x70] sm:$0xff] %v590
        %607 = vst [vmem:[#allocation2 + $0x78] sm:$0xff] %v591
        // Predicated region
        $region41: #{tpu_custom_call.1} parent=27 // pred_check
          %p608 = pneg %p214
        $region42: #{tpu_custom_call.1} parent=27 // pred_check_branch
          %610 = sbr.rel (%p608) target = $region44
        $region43: #{tpu_custom_call.1} parent=27 // pred_region
          %v611 = vld [vmem:[#allocation2] sm:$0xff]
          %v612 = vld [vmem:[#allocation2 + $0x8] sm:$0xff]
          %v613 = vld [vmem:[#allocation2 + $0x10] sm:$0xff]
          %v614 = vld [vmem:[#allocation2 + $0x18] sm:$0xff]
          %v615 = vld [vmem:[#allocation2 + $0x20] sm:$0xff]
          %v616 = vld [vmem:[#allocation2 + $0x28] sm:$0xff]
          %v617 = vld [vmem:[#allocation2 + $0x30] sm:$0xff]
          %v618 = vld [vmem:[#allocation2 + $0x38] sm:$0xff]
          %v619 = vld [vmem:[#allocation2 + $0x40] sm:$0xff]
          %v620 = vld [vmem:[#allocation2 + $0x48] sm:$0xff]
          %v621 = vld [vmem:[#allocation2 + $0x50] sm:$0xff]
          %v622 = vld [vmem:[#allocation2 + $0x58] sm:$0xff]
          %v623 = vld [vmem:[#allocation2 + $0x60] sm:$0xff]
          %v624 = vld [vmem:[#allocation2 + $0x68] sm:$0xff]
          %v625 = vld [vmem:[#allocation2 + $0x70] sm:$0xff]
          %v626 = vld [vmem:[#allocation2 + $0x78] sm:$0xff]
          %v627 = vpack.c.bf16 %v612, %v611
          %v628 = vpack.c.bf16 %v614, %v613
          %v629 = vpack.c.bf16 %v616, %v615
          %v630 = vpack.c.bf16 %v618, %v617
          %v631 = vpack.c.bf16 %v620, %v619
          %v632 = vpack.c.bf16 %v622, %v621
          %v633 = vpack.c.bf16 %v624, %v623
          %v634 = vpack.c.bf16 %v626, %v625
          %v643 = vunpack.c.l.b16 %v627
          %v644 = vunpack.c.h.b16 %v627
          %v645 = vunpack.c.l.b16 %v628
          %v646 = vunpack.c.h.b16 %v628
          %v647 = vunpack.c.l.b16 %v629
          %v648 = vunpack.c.h.b16 %v629
          %v649 = vunpack.c.l.b16 %v630
          %v650 = vunpack.c.h.b16 %v630
          %v651 = vunpack.c.l.b16 %v631
          %v652 = vunpack.c.h.b16 %v631
          %v653 = vunpack.c.l.b16 %v632
          %v654 = vunpack.c.h.b16 %v632
          %v655 = vunpack.c.l.b16 %v633
          %v656 = vunpack.c.h.b16 %v633
          %v657 = vunpack.c.l.b16 %v634
          %v658 = vunpack.c.h.b16 %v634
          %v659 = vpack.c.b16 %v643, %v643
          %v660 = vpack.c.b16 %v644, %v644
          %v661 = vpack.c.b16 %v645, %v645
          %v662 = vpack.c.b16 %v646, %v646
          %v663 = vpack.c.b16 %v647, %v647
          %v664 = vpack.c.b16 %v648, %v648
          %v665 = vpack.c.b16 %v649, %v649
          %v666 = vpack.c.b16 %v650, %v650
          %v667 = vpack.c.b16 %v651, %v651
          %v668 = vpack.c.b16 %v652, %v652
          %v669 = vpack.c.b16 %v653, %v653
          %v670 = vpack.c.b16 %v654, %v654
          %v671 = vpack.c.b16 %v655, %v655
          %v672 = vpack.c.b16 %v656, %v656
          %v673 = vpack.c.b16 %v657, %v657
          %v674 = vpack.c.b16 %v658, %v658
          %691 = vst [vmem:[%s209] sm:$0xf] %v659
          %692 = vst [vmem:[%s209 + $0x4] sm:$0xf] %v660
          %693 = vst [vmem:[%s209 + $0x8] sm:$0xf] %v661
          %694 = vst [vmem:[%s209 + $0xc] sm:$0xf] %v662
          %695 = vst [vmem:[%s209 + $0x10] sm:$0xf] %v663
          %696 = vst [vmem:[%s209 + $0x14] sm:$0xf] %v664
          %697 = vst [vmem:[%s209 + $0x18] sm:$0xf] %v665
          %698 = vst [vmem:[%s209 + $0x1c] sm:$0xf] %v666
          %699 = vst [vmem:[%s209 + $0x20] sm:$0xf] %v667
          %700 = vst [vmem:[%s209 + $0x24] sm:$0xf] %v668
          %701 = vst [vmem:[%s209 + $0x28] sm:$0xf] %v669
          %702 = vst [vmem:[%s209 + $0x2c] sm:$0xf] %v670
          %703 = vst [vmem:[%s209 + $0x30] sm:$0xf] %v671
          %704 = vst [vmem:[%s209 + $0x34] sm:$0xf] %v672
          %705 = vst [vmem:[%s209 + $0x38] sm:$0xf] %v673
          %706 = vst [vmem:[%s209 + $0x3c] sm:$0xf] %v674
        $region44: #{tpu_custom_call.1} parent=27 // pred_fallthru
          _
        %s707 = sand.u32 %s103, 1
        %s708 = scalar_lea.sflag [#allocation5], %s707
        %s709 = sand.u32 %s103, 1
        %s710 = smul.addr %s709, 64
        %s711 = scalar_lea.vmem [#allocation8], %s710
        // Predicated region
        $region45: #{tpu_custom_call.1} parent=27 // pred_check
          %p712 = pneg %p113
        $region46: #{tpu_custom_call.1} parent=27 // pred_check_branch
          %714 = sbr.rel (%p712) target = $region48
        $region47: #{tpu_custom_call.1} parent=27 // pred_region
          %s715 = smul.u32 16, %s25
          %s717 = ssub.s32 1024, 1024
          %718 = vsyncadd %s708, %s717
          %s719 = sadd.s32 %s26, %s715
          %s720 = smul.addr %s719, 64
          %s721 = scalar_lea.hbm %s2, %s720
          %s722 = sshll.u32 %s711, 4
          %s723 = int_to_ptr.vmem [resolvable:$true] %s722
          %728 = dma.vmem_to_hbm [thread:$0]  %s723, 1024, %s721, %s708, 64, 64, 4
        $region48: #{tpu_custom_call.1} parent=27 // pred_fallthru
          _
      $region28: #{tpu_custom_call.1} parent=5 // pred_fallthru
        _
      %p729 = scmp.le.s32.totalorder 2, %s15
      // Predicated region
      $region49: #{tpu_custom_call.1} parent=5 // pred_check
        %p730 = pneg %p729
      $region50: #{tpu_custom_call.1} parent=5 // pred_check_branch
        %732 = sbr.rel (%p730) target = $region52
      $region51: #{tpu_custom_call.1} parent=5 // pred_region
        %s733 = ssub.s32 %s15, 2
        // Predicated region
        $region53: #{tpu_custom_call.1} parent=51 // pred_check
          %p734 = pneg %p119
        $region54: #{tpu_custom_call.1} parent=51 // pred_check_branch
          %736 = sbr.rel (%p734) target = $region56
        $region55: #{tpu_custom_call.1} parent=51 // pred_region
          %s737 = sand.u32 %s104, 1
          %s738 = scalar_lea.sflag [#allocation5], %s737
          %s739 = sand.u32 %s104, 1
          %s740 = smul.addr %s739, 64
          %s741 = scalar_lea.vmem [#allocation8], %s740
          %742 = dma.done %s738, 1024
        $region56: #{tpu_custom_call.1} parent=51 // pred_fallthru
          _
      $region52: #{tpu_custom_call.1} parent=5 // pred_fallthru
        _
    $region6: #{tpu_custom_call.1} parent=1 // loop_footer
      %s19 = sadd.s32 1, %s15
    $region7: #{tpu_custom_call.1} parent=1 // loop_footer_branch
      %14 = sbr.rel target = $region3
    $region8: #{tpu_custom_call.1} parent=1 // loop_exit
      _
    %743 = vsyncpa [#allocation4], 1
    %s744 = scalar_lea.sflag [#allocation4], 1
    %745 = vsyncpa %s744, 1
    %746 = vsyncpa [#allocation7], 1
    %747 = vsyncpa [#allocation5], 1
    %s748 = scalar_lea.sflag [#allocation5], 1
    %749 = vsyncpa %s748, 1

</llo_original>
